<compile_context>
chip_gen: v7x
topology: tpu7x:2x2x1
jax: 0.10.0
libtpu: 0.0.40
codegen_flags: <defaults>
</compile_context>

<pallas_src>
import jax
import jax.numpy as jnp
from jax import lax
from jax.experimental import pallas as pl
from jax.experimental.pallas import tpu as pltpu

SEASON = 7
SUPER = 56  # lcm(7, 8): sublane-aligned repetition unit


def _make_kernel(pred_len: int):
    n_super = pred_len // SUPER
    use_super = n_super >= 1

    def kernel(tail_ref, o_ref):
        # tail_ref: (Bb, SEASON, C)     seasonal tail for this batch tile
        # o_ref   : (Bb, pred_len, C)
        tail = tail_ref[...]                                   # native dtype, no cast

        if use_super:
            # Build the 56-row super-season once per block (8 copies of the tail),
            # then emit 8-aligned bulk stores.
            ss = jnp.tile(tail, (1, SUPER // SEASON, 1))       # (Bb, 56, C)
            for r in range(n_super):
                o_ref[:, pl.ds(r * SUPER, SUPER), :] = ss
            rem = pred_len % SUPER
            if rem:
                o_ref[:, pl.ds(n_super * SUPER, rem), :] = ss[:, :rem, :]
        else:
            n_full = pred_len // SEASON
            for r in range(n_full):
                o_ref[:, pl.ds(r * SEASON, SEASON), :] = tail
            rem = pred_len % SEASON
            if rem:
                o_ref[:, pl.ds(n_full * SEASON, rem), :] = tail[:, :rem, :]

    return kernel


def _pick_batch_tile(B: int, pred_len: int, C: int, itemsize: int) -> int:
    """Pick a batch tile Bb (dividing B): ~2 MiB output tile, >=2 grid steps if possible."""
    target_bytes = 2 * 1024 * 1024
    per_batch = max(pred_len * C * itemsize, 1)
    bb = max(1, min(B, target_bytes // per_batch))
    # Keep at least 2 grid steps (megacore on v7x) when the batch allows it.
    if bb >= B and B >= 2:
        bb = pl.cdiv(B, 2)
    # Round down to a divisor of B so every block is full (no ragged edge blocks).
    while B % bb != 0:
        bb -= 1
    return bb


def seasonal_naive_forward(x_enc, x_mark_enc=None, x_dec=None, x_mark_dec=None,
                           mask=None, *, pred_len: int):
    """Pallas implementation of Model.forward. Only x_enc is used (as in PyTorch)."""
    B, S, C = x_enc.shape
    assert S >= SEASON, "seq_len must be >= 7"

    # Slice only the last season in the wrapper so the kernel DMAs 7 rows/batch.
    tail = lax.slice_in_dim(x_enc, S - SEASON, S, axis=1)             # (B, 7, C)

    itemsize = jnp.dtype(x_enc.dtype).itemsize
    bb = _pick_batch_tile(B, pred_len, C, itemsize)
    grid = (B // bb,)

    out_shape = jax.ShapeDtypeStruct((B, pred_len, C), x_enc.dtype)
    cost = pl.CostEstimate(
        flops=0,                                          # pure data movement
        transcendentals=0,
        bytes_accessed=(B * SEASON * C + B * pred_len * C) * itemsize,
    )

    return pl.pallas_call(
        _make_kernel(pred_len),
        out_shape=out_shape,
        grid=grid,
        in_specs=[pl.BlockSpec((bb, SEASON, C), lambda b: (b, 0, 0))],
        out_specs=pl.BlockSpec((bb, pred_len, C), lambda b: (b, 0, 0)),
        compiler_params=pltpu.CompilerParams(
            dimension_semantics=("parallel",)),
        cost_estimate=cost,
    )(tail)


if __name__ == "__main__":
    # Small, deterministic example consistent with the module's forward signature.
    B, seq_len, pred_len, C = 2, 16, 8, 16
    key = jax.random.PRNGKey(0)
    k1, k2, k3, k4 = jax.random.split(key, 4)
    x_enc = jax.random.normal(k1, (B, seq_len, C), dtype=jnp.float32)
    x_mark_enc = jax.random.normal(k2, (B, seq_len, 4), dtype=jnp.float32)   # unused
    x_dec = jax.random.normal(k3, (B, pred_len, C), dtype=jnp.float32)       # unused
    x_mark_dec = jax.random.normal(k4, (B, pred_len, 4), dtype=jnp.float32)  # unused

    out = seasonal_naive_forward(x_enc, x_mark_enc, x_dec, x_mark_dec,
                                 pred_len=pred_len)
    out = jax.block_until_ready(out)

    # Reference check against plain-JAX equivalent of the PyTorch forward.
    reps = pred_len // SEASON + 1
    ref = jnp.tile(x_enc[:, -SEASON:, :], (1, reps, 1))[:, :pred_len, :]
    ref = ref[:, -pred_len:, :]
    assert out.shape == (B, pred_len, C)
    assert jnp.allclose(out, ref), "mismatch vs reference"

    # Also exercise the sublane-aligned super-season path (pred_len >= 56).
    pred_len2 = 120
    out2 = jax.block_until_ready(
        seasonal_naive_forward(x_enc, pred_len=pred_len2))
    reps2 = pred_len2 // SEASON + 1
    ref2 = jnp.tile(x_enc[:, -SEASON:, :], (1, reps2, 1))[:, :pred_len2, :]
    assert out2.shape == (B, pred_len2, C)
    assert jnp.allclose(out2, ref2), "mismatch vs reference (super-season path)"

    print("KERNEL_OK")
</pallas_src>

<mosaic_0001>
module attributes {stable_mosaic.version = 11 : i64} {
  func.func @kernel(%arg0: i32, %arg1: memref<1x7x16xf32, #tpu.memory_space<vmem>>, %arg2: memref<1x8x16xf32, #tpu.memory_space<vmem>>) attributes {dimension_semantics = [#tpu.dimension_semantics<parallel>], iteration_bounds = array<i64: 2>, scalar_prefetch = 0 : i64, scratch_operands = 0 : i64, tpu.core_type = #tpu.core_type<tc>, window_params = [{transform_indices = @transform_0, window_bounds = array<i64: 1, 7, 16>}, {transform_indices = @transform_1, window_bounds = array<i64: 1, 8, 16>}]} {
    %c0 = arith.constant 0 : index
    %c0_0 = arith.constant 0 : index
    %c0_1 = arith.constant 0 : index
    %0 = vector.load %arg1[%c0, %c0_0, %c0_1] : memref<1x7x16xf32, #tpu.memory_space<vmem>>, vector<1x7x16xf32>
    %c0_2 = arith.constant 0 : index
    %c0_3 = arith.constant 0 : index
    %c0_4 = arith.constant 0 : index
    %1 = vector.load %arg2[%c0_2, %c0_3, %c0_4] : memref<1x8x16xf32, #tpu.memory_space<vmem>>, vector<1x7x16xf32>
    tpu.vector_store %arg2[%c0_2, %c0_3, %c0_4], %0 {strides = array<i32>} : memref<1x8x16xf32, #tpu.memory_space<vmem>>, vector<1x7x16xf32>,
    %2 = vector.extract_strided_slice %0 {offsets = [0, 0, 0], sizes = [1, 1, 16], strides = [1, 1, 1]} : vector<1x7x16xf32> to vector<1x1x16xf32>
    %c0_5 = arith.constant 0 : index
    %c7 = arith.constant 7 : index
    %c0_6 = arith.constant 0 : index
    %3 = vector.load %arg2[%c0_5, %c7, %c0_6] : memref<1x8x16xf32, #tpu.memory_space<vmem>>, vector<1x1x16xf32>
    tpu.vector_store %arg2[%c0_5, %c7, %c0_6], %2 {strides = array<i32>} : memref<1x8x16xf32, #tpu.memory_space<vmem>>, vector<1x1x16xf32>,
    return
  }
  func.func @transform_0(%arg0: i32) -> (i32, i32, i32) {
    %c0_i32 = arith.constant 0 : i32
    %c0_i32_0 = arith.constant 0 : i32
    %c0_i32_1 = arith.constant 0 : i32
    return %arg0, %c0_i32, %c0_i32_0 : i32, i32, i32
  }
  func.func @transform_1(%arg0: i32) -> (i32, i32, i32) {
    %c0_i32 = arith.constant 0 : i32
    %c0_i32_0 = arith.constant 0 : i32
    %c0_i32_1 = arith.constant 0 : i32
    return %arg0, %c0_i32, %c0_i32_0 : i32, i32, i32
  }
}

</mosaic_0001>

<llo_original>
// kernel: tpu_custom_call.1
$region0: #{tpu_custom_call.1}
  #allocation0 [shape = 'u32[]', space=smem, size = 0x4, offset = 0x4, fixed_abs, tag = 'smem constant byte address 0x4 - core index']
  #allocation1 [shape = 'u32[144,128]{1,0:T(1,128)}', space=vmem, size = 0x12000, scoped, tag = 'internal scratch']
  %s0 = inlined_call_operand.vmem [shape: f32[2,7,16], index: 0, kind: input, shape index: {}]
  %s1 = inlined_call_operand.hbm [shape: f32[2,8,16], index: 1, kind: output, shape index: {}]
  %s2 = sld [smem:[#allocation0]]
  $region37: #{tpu_custom_call.1} parent=0
    _
  %s4 = ssub.s32 1, %s2
  %s5 = scalar_select 0, %s4, %s2
  $region1: #{tpu_custom_call.1} parent=0
    #allocation2 [shape = 'u8[8192]{0}', space=vmem, size = 0x2000, scoped, tag = 'output window, operand 0']
    #allocation3 [shape = 's32[2]{0}', space=sflag, size = 0x8, scoped, tag = 'scoped memory for tpu_custom_call.1']
    %6 = vsyncpa [#allocation3], 0
    %s7 = scalar_lea.sflag [#allocation3], 1
    %8 = vsyncpa %s7, 0
    loop: start=0, step=1, limit=4
    $region2: #{tpu_custom_call.1} parent=1 // loop_pre_header
      _
    $region3: #{tpu_custom_call.1} parent=1 // loop_header
      %s10 = sphi 0, %s14
      %p11 = scmp.ge.s32.totalorder %s10, 4
      %s20 = sphi 0, %s22
      %s23 = sphi 0, %s20
      %s24 = sphi 0, %s23
      %s40 = sphi 0, %s24
      %s46 = sphi 0, %s48
      %s49 = sphi 0, %s46
      %s50 = sphi 0, %s49
      %s66 = sphi 0, %s50
    $region4: #{tpu_custom_call.1} parent=1 // loop_header_branch
      %13 = sbr.rel (%p11) target = $region8
    $region5: #{tpu_custom_call.1} parent=1 // loop_body
      %s15 = ssub.s32 %s10, 1
      %s16 = ssub.s32 %s10, 2
      %s17 = sadd.s32 %s10, 1
      %s18 = ssub.s32 %s10, %s17
      %p19 = scmp.eq.s32.totalorder %s18, 0
      %s21 = sadd.s32 %s20, 1
      %s22 = scalar_select %p19, %s20, %s21
      %p25 = pneg %p19
      %p26 = scmp.eq.s32.totalorder %s10, 1
      %p27 = por %p25, %p26
      %p28 = scmp.ne.s32.totalorder %s20, %s23
      %p29 = scmp.eq.s32.totalorder %s10, 0
      %p30 = por %p28, %p29
      %p31 = scmp.ne.s32.totalorder %s20, %s23
      %p32 = scmp.eq.s32.totalorder %s15, 1
      %p33 = por %p31, %p32
      %p34 = scmp.ne.s32.totalorder %s23, %s24
      %p35 = scmp.eq.s32.totalorder %s15, 0
      %p36 = por %p34, %p35
      %p37 = scmp.ne.s32.totalorder %s23, %s24
      %p38 = scmp.eq.s32.totalorder %s16, 1
      %p39 = por %p37, %p38
      %p41 = scmp.ne.s32.totalorder %s24, %s40
      %p42 = scmp.eq.s32.totalorder %s16, 0
      %p43 = por %p41, %p42
      %s44 = ssub.s32 %s10, %s17
      %p45 = scmp.eq.s32.totalorder %s44, 0
      %s47 = sadd.s32 %s46, 1
      %s48 = scalar_select %p45, %s46, %s47
      %p51 = pneg %p45
      %p52 = scmp.eq.s32.totalorder %s10, 1
      %p53 = por %p51, %p52
      %p54 = scmp.ne.s32.totalorder %s46, %s49
      %p55 = scmp.eq.s32.totalorder %s10, 0
      %p56 = por %p54, %p55
      %p57 = scmp.ne.s32.totalorder %s46, %s49
      %p58 = scmp.eq.s32.totalorder %s15, 1
      %p59 = por %p57, %p58
      %p60 = scmp.ne.s32.totalorder %s49, %s50
      %p61 = scmp.eq.s32.totalorder %s15, 0
      %p62 = por %p60, %p61
      %p63 = scmp.ne.s32.totalorder %s49, %s50
      %p64 = scmp.eq.s32.totalorder %s16, 1
      %p65 = por %p63, %p64
      %p67 = scmp.ne.s32.totalorder %s50, %s66
      %p68 = scmp.eq.s32.totalorder %s16, 0
      %p69 = por %p67, %p68
      %p70 = scmp.le.s32.totalorder 1, %s10
      %p71 = scmp.lt.s32.totalorder %s10, 3
      %p72 = pnand %p70, %p71
      %p73 = pneg %p72
      // Predicated region
      $region9: #{tpu_custom_call.1} parent=5 // pred_check
        _
      $region10: #{tpu_custom_call.1} parent=5 // pred_check_branch
        %75 = sbr.rel (%p72) target = $region12
      $region11: #{tpu_custom_call.1} parent=5 // pred_region
        %s76 = ssub.s32 %s10, 1
      $region12: #{tpu_custom_call.1} parent=5 // pred_fallthru
        _
      %p77 = scmp.lt.s32.totalorder %s10, 2
      // Predicated region
      $region13: #{tpu_custom_call.1} parent=5 // pred_check
        %p78 = pneg %p77
      $region14: #{tpu_custom_call.1} parent=5 // pred_check_branch
        %80 = sbr.rel (%p78) target = $region16
      $region15: #{tpu_custom_call.1} parent=5 // pred_region
        // Predicated region
        $region17: #{tpu_custom_call.1} parent=15 // pred_check
          %p81 = pneg %p30
        $region18: #{tpu_custom_call.1} parent=15 // pred_check_branch
          %83 = sbr.rel (%p81) target = $region20
        $region19: #{tpu_custom_call.1} parent=15 // pred_region
          %p84 = scmp.lt.s32.totalorder %s10, 1
          %s85 = scalar_select %p84, %s10, 1
          %s86 = smul.addr %s85, 8
          %s87 = scalar_lea.vmem %s0, %s86
        $region20: #{tpu_custom_call.1} parent=15 // pred_fallthru
          _
      $region16: #{tpu_custom_call.1} parent=5 // pred_fallthru
        _
      %p88 = scmp.le.s32.totalorder 1, %s10
      %p89 = scmp.lt.s32.totalorder %s10, 3
      %p90 = pnand %p88, %p89
      %p91 = pneg %p90
      // Predicated region
      $region21: #{tpu_custom_call.1} parent=5 // pred_check
        _
      $region22: #{tpu_custom_call.1} parent=5 // pred_check_branch
        %93 = sbr.rel (%p90) target = $region24
      $region23: #{tpu_custom_call.1} parent=5 // pred_region
        %s94 = ssub.s32 %s10, 1
        %p95 = scmp.lt.s32.totalorder %s15, 1
        %s96 = scalar_select %p95, %s15, 1
        %s97 = smul.addr %s96, 8
        %s98 = scalar_lea.vmem %s0, %s97
        %p99 = pneg %p36
        %p100 = pneg %p33
        %p101 = pneg %p62
        %p102 = pneg %p59
        %s103 = sand.u32 %s49, 1
        %s104 = scalar_lea.sflag [#allocation3], %s103
        %s105 = sand.u32 %s49, 1
        %s106 = smul.addr %s105, 8
        %s107 = scalar_lea.vmem [#allocation2], %s106
        %p108 = scmp.lt.s32.totalorder %s15, 1
        %s109 = scalar_select %p108, %s15, 1
        %s110 = smul.addr %s109, 8
        %s111 = scalar_lea.vmem %s0, %s110
        %v112 = vld [vmem:[%s111] sm:$0x7f]
        %vm113 = vcmask 129024
        %114 = vst.msk [vmem:[%s107] sm:$0x7f] %vm113, %v112
        %vm115 = vcmask 122880
        %116 = vst.msk [vmem:[%s107 + $0x7] sm:$0x1] %vm115, %v112
        %s117 = sand.u32 %s49, 1
        %s118 = scalar_lea.sflag [#allocation3], %s117
        %s119 = sand.u32 %s49, 1
        %s120 = smul.addr %s119, 8
        %s121 = scalar_lea.vmem [#allocation2], %s120
        // Predicated region
        $region25: #{tpu_custom_call.1} parent=23 // pred_check
          %p122 = pneg %p59
        $region26: #{tpu_custom_call.1} parent=23 // pred_check_branch
          %124 = sbr.rel (%p122) target = $region28
        $region27: #{tpu_custom_call.1} parent=23 // pred_region
          %s126 = ssub.s32 128, 128
          %127 = vsyncadd %s118, %s126
          %s128 = smul.addr %s15, 128
          %s129 = scalar_lea.hbm %s1, %s128
          %s131 = sshll.u32 %s121, 4
          %s132 = int_to_ptr.vmem [resolvable:$true] %s131
          %134 = dma.vmem_to_hbm [thread:$0]  %s132, 128, %s129, %s118
        $region28: #{tpu_custom_call.1} parent=23 // pred_fallthru
          _
      $region24: #{tpu_custom_call.1} parent=5 // pred_fallthru
        _
      %p135 = scmp.le.s32.totalorder 2, %s10
      // Predicated region
      $region29: #{tpu_custom_call.1} parent=5 // pred_check
        %p136 = pneg %p135
      $region30: #{tpu_custom_call.1} parent=5 // pred_check_branch
        %138 = sbr.rel (%p136) target = $region32
      $region31: #{tpu_custom_call.1} parent=5 // pred_region
        %s139 = ssub.s32 %s10, 2
        // Predicated region
        $region33: #{tpu_custom_call.1} parent=31 // pred_check
          %p140 = pneg %p65
        $region34: #{tpu_custom_call.1} parent=31 // pred_check_branch
          %142 = sbr.rel (%p140) target = $region36
        $region35: #{tpu_custom_call.1} parent=31 // pred_region
          %s143 = sand.u32 %s50, 1
          %s144 = scalar_lea.sflag [#allocation3], %s143
          %s145 = sand.u32 %s50, 1
          %s146 = smul.addr %s145, 8
          %s147 = scalar_lea.vmem [#allocation2], %s146
          %148 = dma.done %s144, 128
        $region36: #{tpu_custom_call.1} parent=31 // pred_fallthru
          _
      $region32: #{tpu_custom_call.1} parent=5 // pred_fallthru
        _
    $region6: #{tpu_custom_call.1} parent=1 // loop_footer
      %s14 = sadd.s32 1, %s10
    $region7: #{tpu_custom_call.1} parent=1 // loop_footer_branch
      %9 = sbr.rel target = $region3
    $region8: #{tpu_custom_call.1} parent=1 // loop_exit
      _
    %149 = vsyncpa [#allocation3], 1
    %s150 = scalar_lea.sflag [#allocation3], 1
    %151 = vsyncpa %s150, 1

</llo_original>
